<compile_context>
chip_gen: v7x
topology: tpu7x:2x2x1
jax: 0.10.0
libtpu: 0.0.40
codegen_flags: <defaults>
</compile_context>

<pallas_src>
import functools

import jax
import jax.numpy as jnp
import numpy as np
from jax import lax
from jax.experimental import pallas as pl
from jax.experimental.pallas import tpu as pltpu


def _round_robin_sum(term_fns, n_acc):
    """Sum deferred terms using several independent accumulators (breaks the
    serial VPU add chain; terms are built lazily to keep live ranges short)."""
    n = len(term_fns)
    n_acc = max(1, min(n_acc, n))
    accs = [term_fns[i]() for i in range(n_acc)]
    for i in range(n_acc, n):
        accs[i % n_acc] = accs[i % n_acc] + term_fns[i]()
    total = accs[0]
    for a in accs[1:]:
        total = total + a
    return total


def _inverted_residual_kernel(x_ref, w1_ref, b1_ref, wmask_ref, b2_ref,
                              w3_ref, b3_ref, *rest,
                              kernel_size, stride, apply_residual, W):
    """One chunk (>=1 batch images folded onto the lane axis) per grid step."""
    if stride == 1:
        (o_ref,) = rest
        sel_ref = None
    else:
        sel_ref, o_ref = rest

    Cin = x_ref.shape[1]
    Cmid = w1_ref.shape[0]
    Cout = w3_ref.shape[0]
    BHW = x_ref.shape[2]                 # (#images in chunk) * H * W, lane axis
    K = kernel_size
    p = K // 2

    x = x_ref[0]                         # (Cin, BHW)   lane-dense
    w1 = w1_ref[...]                     # (Cmid, Cin)  BN1 scale folded
    w3 = w3_ref[...]                     # (Cout, Cmid) BN3 scale folded

    # ---- 1x1 expand conv: VPU broadcast-MAC, 2 independent accumulators -----
    # (Cin is 4..12: an MXU matmul would contract over only a few of 128/256
    #  rows and would hit the f32-on-MXU precision path, so stay on the VPU.)
    h = _round_robin_sum(
        [lambda ci=ci: w1[:, ci:ci + 1] * x[ci:ci + 1, :] for ci in range(Cin)],
        n_acc=2)
    h = jnp.maximum(h + b1_ref[...], 0.0)          # folded BN bias + ReLU

    # ---- depthwise KxK conv: K*K register-level lane rotations (XLU) --------
    # wmask_ref[t] = (per-channel BN-scaled tap weight) * (boundary validity),
    # precomputed on the host, so each tap is ONE VPU multiply of the rolled
    # activation.  The validity mask also zeroes any roll that wraps across the
    # image boundary into the neighbouring batch image on the lane axis.
    def tap(kh, kw):
        t = kh * K + kw
        d = (kh - p) * W + (kw - p)                 # flat source offset
        shifted = h if d == 0 else pltpu.roll(h, shift=(-d) % BHW, axis=1)
        return shifted * wmask_ref[t]

    taps = [functools.partial(tap, kh, kw) for kh in range(K) for kw in range(K)]
    acc = _round_robin_sum(taps, n_acc=3)
    dw = jnp.maximum(acc + b2_ref[...], 0.0)        # folded BN bias + ReLU

    # ---- stride-2 subsample via exact 0/1 block-diagonal selection matmul ---
    # Each output column selects exactly one dw column; result validated to
    # 1e-4 against the f32 lax-conv reference in-script.
    if stride != 1:
        dw = jnp.dot(dw, sel_ref[...], preferred_element_type=jnp.float32)

    # ---- 1x1 project conv: VPU broadcast-MAC, 2 independent accumulators ----
    out = _round_robin_sum(
        [lambda cm=cm: w3[:, cm:cm + 1] * dw[cm:cm + 1, :] for cm in range(Cmid)],
        n_acc=2)
    out = out + b3_ref[...]

    if apply_residual:                               # static python flag
        out = out + x

    o_ref[0] = out.astype(o_ref.dtype)


def inverted_residual(x_nchw, params, *, kernel_size, stride, apply_residual,
                      num_chunks=1):
    """NCHW in, NCHW out.

    num_chunks=1: whole batch folded onto the lane axis, single grid step
                  (best for v5e/v6e single TensorCore, lane-dense stores).
    num_chunks=2: batch split across two parallel grid steps (v7x, 2 TCs).
    """
    N, Cin, H, W = x_nchw.shape
    assert N % num_chunks == 0
    G = num_chunks
    B = N // G                                       # images per chunk
    w1, s1, b1, wdw, s2, b2, w3, s3, b3 = params
    Cmid = w1.shape[1]
    Cout = w3.shape[1]
    K = kernel_size
    p = K // 2
    Ho = (H + 2 * p - K) // stride + 1
    Wo = (W + 2 * p - K) // stride + 1
    HW, HoWo = H * W, Ho * Wo
    BHW, BHoWo = B * HW, B * HoWo

    # ---- host-side prep: fold BN scales into weights, batch-on-lane layout ---
    x_kern = jnp.transpose(x_nchw.reshape(G, B, Cin, HW), (0, 2, 1, 3))
    x_kern = x_kern.reshape(G, Cin, BHW)             # (G, Cin, B*HW)
    w1k = (w1 * s1).T                                # (Cmid, Cin)
    b1k = b1.T                                       # (Cmid, 1)
    b2k = b2.T                                       # (Cmid, 1)
    w3k = (w3 * s3).T                                # (Cout, Cmid)
    b3k = b3.T                                       # (Cout, 1)
    wdwk = (wdw * s2.reshape(1, 1, Cmid)).reshape(K * K, Cmid)   # (K*K, Cmid)

    # Per-tap validity masks for the circular-roll depthwise formulation,
    # tiled across the B images of a chunk and folded into the weights.
    ii = np.arange(H)[:, None]
    jj = np.arange(W)[None, :]
    mask_np = np.zeros((K * K, HW), np.float32)
    for kh in range(K):
        for kw in range(K):
            dh, dwd = kh - p, kw - p
            valid = ((ii + dh >= 0) & (ii + dh < H) &
                     (jj + dwd >= 0) & (jj + dwd < W))
            mask_np[kh * K + kw] = valid.reshape(-1).astype(np.float32)
    mask_tiled = jnp.asarray(np.tile(mask_np, (1, B)))           # (K*K, B*HW)
    wmask = wdwk[:, :, None] * mask_tiled[:, None, :]            # (K*K, Cmid, B*HW)

    inputs = [x_kern, w1k, b1k, wmask, b2k, w3k, b3k]

    def rep(shape):                                   # replicated (same block every step)
        nd = len(shape)
        return pl.BlockSpec(shape, lambda c, _nd=nd: (0,) * _nd)

    in_specs = [
        pl.BlockSpec((1, Cin, BHW), lambda c: (c, 0, 0)),
        rep((Cmid, Cin)), rep((Cmid, 1)),
        rep((K * K, Cmid, BHW)), rep((Cmid, 1)),
        rep((Cout, Cmid)), rep((Cout, 1)),
    ]

    if stride != 1:
        # Exact 0/1 block-diagonal (over the chunk's images) lane-subsampling
        # matrix.  TODO(synk): replace with a separable row/column select (or
        # strided write-back) before scaling to real MnasNet resolutions —
        # this dense select is O(HW*HoWo) and would blow v7x's 64 MiB VMEM.
        sel_np = np.zeros((BHW, BHoWo), np.float32)
        for b in range(B):
            for i in range(Ho):
                for j in range(Wo):
                    sel_np[b * HW + (i * stride) * W + j * stride,
                           b * HoWo + i * Wo + j] = 1.0
        inputs.append(jnp.asarray(sel_np))
        in_specs.append(rep((BHW, BHoWo)))

    kern = functools.partial(_inverted_residual_kernel,
                             kernel_size=K, stride=stride,
                             apply_residual=apply_residual, W=W)

    out_kern = pl.pallas_call(
        kern,
        out_shape=jax.ShapeDtypeStruct((G, Cout, BHoWo), x_nchw.dtype),
        grid_spec=pltpu.PrefetchScalarGridSpec(
            num_scalar_prefetch=0,
            grid=(G,),
            in_specs=in_specs,
            out_specs=pl.BlockSpec((1, Cout, BHoWo), lambda c: (c, 0, 0)),
        ),
        compiler_params=pltpu.CompilerParams(dimension_semantics=("parallel",)),
    )(*inputs)

    out = jnp.transpose(out_kern.reshape(G, Cout, B, HoWo), (0, 2, 1, 3))
    return out.reshape(N, Cout, Ho, Wo)


def init_params(key, in_ch, out_ch, kernel_size, expansion_factor):
    """Deterministic synthetic parameters matching the torch module's shapes."""
    mid = in_ch * expansion_factor
    eps = 1e-5
    keys = jax.random.split(key, 15)

    w1_t = jax.random.normal(keys[0], (mid, in_ch, 1, 1), jnp.float32) * 0.2
    wdw_t = jax.random.normal(keys[1], (mid, 1, kernel_size, kernel_size),
                              jnp.float32) * 0.2
    w3_t = jax.random.normal(keys[2], (out_ch, mid, 1, 1), jnp.float32) * 0.2

    def bn(kg, kb, km, kv, c):
        gamma = jax.random.uniform(kg, (c,), jnp.float32, 0.5, 1.5)
        beta = jax.random.normal(kb, (c,), jnp.float32) * 0.1
        mean = jax.random.normal(km, (c,), jnp.float32) * 0.1
        var = jax.random.uniform(kv, (c,), jnp.float32, 0.5, 1.5)
        scale = gamma / jnp.sqrt(var + eps)
        bias = beta - mean * scale
        return scale.reshape(1, c), bias.reshape(1, c)

    s1, b1 = bn(keys[3], keys[4], keys[5], keys[6], mid)
    s2, b2 = bn(keys[7], keys[8], keys[9], keys[10], mid)
    s3, b3 = bn(keys[11], keys[12], keys[13], keys[14], out_ch)

    w1 = jnp.transpose(w1_t[:, :, 0, 0], (1, 0))             # (in, mid)
    wdw = jnp.transpose(wdw_t[:, 0], (1, 2, 0))              # (K, K, mid)
    w3 = jnp.transpose(w3_t[:, :, 0, 0], (1, 0))             # (mid, out)
    return w1, s1, b1, wdw, s2, b2, w3, s3, b3


def reference_nhwc(x, params, kernel_size, stride, apply_residual):
    """Pure-JAX reference (lax convs) for correctness checking."""
    w1, s1, b1, wdw, s2, b2, w3, s3, b3 = params
    p = kernel_size // 2
    Cmid = w1.shape[1]
    dn = ('NHWC', 'HWIO', 'NHWC')

    h = lax.conv_general_dilated(x, w1.reshape(1, 1, *w1.shape), (1, 1),
                                 'VALID', dimension_numbers=dn)
    h = jnp.maximum(h * s1.reshape(1, 1, 1, -1) + b1.reshape(1, 1, 1, -1), 0.0)
    h = lax.conv_general_dilated(h, wdw.reshape(kernel_size, kernel_size, 1, Cmid),
                                 (stride, stride), [(p, p), (p, p)],
                                 dimension_numbers=dn, feature_group_count=Cmid)
    h = jnp.maximum(h * s2.reshape(1, 1, 1, -1) + b2.reshape(1, 1, 1, -1), 0.0)
    h = lax.conv_general_dilated(h, w3.reshape(1, 1, *w3.shape), (1, 1),
                                 'VALID', dimension_numbers=dn)
    h = h * s3.reshape(1, 1, 1, -1) + b3.reshape(1, 1, 1, -1)
    if apply_residual:
        h = h + x
    return h


if __name__ == "__main__":
    key = jax.random.PRNGKey(0)
    N, H, W = 2, 16, 16
    configs = [
        # residual path: in_ch == out_ch, stride == 1
        dict(in_ch=4, out_ch=4, kernel_size=3, stride=1, expansion_factor=3),
        # non-residual path, 5x5 depthwise
        dict(in_ch=4, out_ch=8, kernel_size=5, stride=1, expansion_factor=2),
        # stride-2 path (selection-matrix subsample, lane-dense 128-wide store)
        dict(in_ch=4, out_ch=8, kernel_size=3, stride=2, expansion_factor=3),
    ]

    for i, cfg in enumerate(configs):
        kx, kp = jax.random.split(jax.random.fold_in(key, i))
        x_nchw = jax.random.normal(kx, (N, cfg['in_ch'], H, W), jnp.float32)
        params = init_params(kp, cfg['in_ch'], cfg['out_ch'],
                             cfg['kernel_size'], cfg['expansion_factor'])
        apply_residual = (cfg['in_ch'] == cfg['out_ch']) and (cfg['stride'] == 1)

        x_nhwc = jnp.transpose(x_nchw, (0, 2, 3, 1))
        y_ref_nhwc = reference_nhwc(x_nhwc, params, cfg['kernel_size'],
                                    cfg['stride'], apply_residual)
        y_ref = np.asarray(jnp.transpose(y_ref_nhwc, (0, 3, 1, 2)))

        # Default: whole batch in one grid step (v5e/v6e); also exercise the
        # 2-chunk v7x variant on the first config.
        chunk_options = (1, 2) if i == 0 else (1,)
        for nc in chunk_options:
            y_nchw = inverted_residual(x_nchw, params,
                                       kernel_size=cfg['kernel_size'],
                                       stride=cfg['stride'],
                                       apply_residual=apply_residual,
                                       num_chunks=nc)
            y_nchw = jax.block_until_ready(y_nchw)
            np.testing.assert_allclose(np.asarray(y_nchw), y_ref,
                                       rtol=1e-4, atol=1e-4)

    print("KERNEL_OK")
</pallas_src>

<mosaic_0001>
module attributes {stable_mosaic.version = 11 : i64} {
  func.func @_inverted_residual_kernel(%arg0: i32, %arg1: memref<1x4x512xf32, #tpu.memory_space<vmem>>, %arg2: memref<12x4xf32, #tpu.memory_space<vmem>>, %arg3: memref<12x1xf32, #tpu.memory_space<vmem>>, %arg4: memref<9x12x512xf32, #tpu.memory_space<vmem>>, %arg5: memref<12x1xf32, #tpu.memory_space<vmem>>, %arg6: memref<4x12xf32, #tpu.memory_space<vmem>>, %arg7: memref<4x1xf32, #tpu.memory_space<vmem>>, %arg8: memref<1x4x512xf32, #tpu.memory_space<vmem>>) attributes {dimension_semantics = [#tpu.dimension_semantics<parallel>], iteration_bounds = array<i64: 1>, scalar_prefetch = 0 : i64, scratch_operands = 0 : i64, tpu.core_type = #tpu.core_type<tc>, window_params = [{transform_indices = @transform_0, window_bounds = array<i64: 1, 4, 512>}, {pipeline_mode = #tpu.pipeline_mode<synchronous>, transform_indices = @transform_1, window_bounds = array<i64: 12, 4>}, {pipeline_mode = #tpu.pipeline_mode<synchronous>, transform_indices = @transform_2, window_bounds = array<i64: 12, 1>}, {pipeline_mode = #tpu.pipeline_mode<synchronous>, transform_indices = @transform_3, window_bounds = array<i64: 9, 12, 512>}, {pipeline_mode = #tpu.pipeline_mode<synchronous>, transform_indices = @transform_4, window_bounds = array<i64: 12, 1>}, {pipeline_mode = #tpu.pipeline_mode<synchronous>, transform_indices = @transform_5, window_bounds = array<i64: 4, 12>}, {pipeline_mode = #tpu.pipeline_mode<synchronous>, transform_indices = @transform_6, window_bounds = array<i64: 4, 1>}, {transform_indices = @transform_7, window_bounds = array<i64: 1, 4, 512>}]} {
    %c0 = arith.constant 0 : index
    %c0_0 = arith.constant 0 : index
    %c0_1 = arith.constant 0 : index
    %0 = vector.load %arg1[%c0, %c0_0, %c0_1] : memref<1x4x512xf32, #tpu.memory_space<vmem>>, vector<1x4x512xf32>
    %1 = vector.shape_cast %0 : vector<1x4x512xf32> to vector<4x512xf32>
    %c0_2 = arith.constant 0 : index
    %c0_3 = arith.constant 0 : index
    %2 = vector.load %arg2[%c0_2, %c0_3] : memref<12x4xf32, #tpu.memory_space<vmem>>, vector<12x4xf32>
    %c0_4 = arith.constant 0 : index
    %c0_5 = arith.constant 0 : index
    %3 = vector.load %arg6[%c0_4, %c0_5] : memref<4x12xf32, #tpu.memory_space<vmem>>, vector<4x12xf32>
    %4 = vector.extract_strided_slice %2 {offsets = [0, 0], sizes = [12, 1], strides = [1, 1]} : vector<12x4xf32> to vector<12x1xf32>
    %5 = vector.extract_strided_slice %1 {offsets = [0, 0], sizes = [1, 512], strides = [1, 1]} : vector<4x512xf32> to vector<1x512xf32>
    %6 = vector.broadcast %4 : vector<12x1xf32> to vector<12x512xf32>
    %7 = vector.broadcast %5 : vector<1x512xf32> to vector<12x512xf32>
    %8 = arith.mulf %6, %7 : vector<12x512xf32>
    %9 = vector.extract_strided_slice %2 {offsets = [0, 1], sizes = [12, 1], strides = [1, 1]} : vector<12x4xf32> to vector<12x1xf32>
    %10 = vector.extract_strided_slice %1 {offsets = [1, 0], sizes = [1, 512], strides = [1, 1]} : vector<4x512xf32> to vector<1x512xf32>
    %11 = vector.broadcast %9 : vector<12x1xf32> to vector<12x512xf32>
    %12 = vector.broadcast %10 : vector<1x512xf32> to vector<12x512xf32>
    %13 = arith.mulf %11, %12 : vector<12x512xf32>
    %14 = vector.extract_strided_slice %2 {offsets = [0, 2], sizes = [12, 1], strides = [1, 1]} : vector<12x4xf32> to vector<12x1xf32>
    %15 = vector.extract_strided_slice %1 {offsets = [2, 0], sizes = [1, 512], strides = [1, 1]} : vector<4x512xf32> to vector<1x512xf32>
    %16 = vector.broadcast %14 : vector<12x1xf32> to vector<12x512xf32>
    %17 = vector.broadcast %15 : vector<1x512xf32> to vector<12x512xf32>
    %18 = arith.mulf %16, %17 : vector<12x512xf32>
    %19 = arith.addf %8, %18 : vector<12x512xf32>
    %20 = vector.extract_strided_slice %2 {offsets = [0, 3], sizes = [12, 1], strides = [1, 1]} : vector<12x4xf32> to vector<12x1xf32>
    %21 = vector.extract_strided_slice %1 {offsets = [3, 0], sizes = [1, 512], strides = [1, 1]} : vector<4x512xf32> to vector<1x512xf32>
    %22 = vector.broadcast %20 : vector<12x1xf32> to vector<12x512xf32>
    %23 = vector.broadcast %21 : vector<1x512xf32> to vector<12x512xf32>
    %24 = arith.mulf %22, %23 : vector<12x512xf32>
    %25 = arith.addf %13, %24 : vector<12x512xf32>
    %26 = arith.addf %19, %25 : vector<12x512xf32>
    %c0_6 = arith.constant 0 : index
    %c0_7 = arith.constant 0 : index
    %27 = vector.load %arg3[%c0_6, %c0_7] : memref<12x1xf32, #tpu.memory_space<vmem>>, vector<12x1xf32>
    %28 = vector.broadcast %27 : vector<12x1xf32> to vector<12x512xf32>
    %29 = arith.addf %26, %28 : vector<12x512xf32>
    %cst = arith.constant 0.000000e+00 : f32
    %30 = vector.broadcast %cst : f32 to vector<12x512xf32>
    %31 = arith.maximumf %29, %30 : vector<12x512xf32>
    %c17_i32 = arith.constant 17 : i32
    %32 = tpu.dynamic_rotate %31 by %c17_i32 dim 1 : vector<12x512xf32>, i32 -> vector<12x512xf32>
    %c0_8 = arith.constant 0 : index
    %c0_9 = arith.constant 0 : index
    %c0_10 = arith.constant 0 : index
    %33 = vector.load %arg4[%c0_8, %c0_9, %c0_10] : memref<9x12x512xf32, #tpu.memory_space<vmem>>, vector<1x12x512xf32>
    %34 = vector.shape_cast %33 : vector<1x12x512xf32> to vector<12x512xf32>
    %35 = arith.mulf %32, %34 : vector<12x512xf32>
    %c16_i32 = arith.constant 16 : i32
    %36 = tpu.dynamic_rotate %31 by %c16_i32 dim 1 : vector<12x512xf32>, i32 -> vector<12x512xf32>
    %c1 = arith.constant 1 : index
    %c0_11 = arith.constant 0 : index
    %c0_12 = arith.constant 0 : index
    %37 = vector.load %arg4[%c1, %c0_11, %c0_12] : memref<9x12x512xf32, #tpu.memory_space<vmem>>, vector<1x12x512xf32>
    %38 = vector.shape_cast %37 : vector<1x12x512xf32> to vector<12x512xf32>
    %39 = arith.mulf %36, %38 : vector<12x512xf32>
    %c15_i32 = arith.constant 15 : i32
    %40 = tpu.dynamic_rotate %31 by %c15_i32 dim 1 : vector<12x512xf32>, i32 -> vector<12x512xf32>
    %c2 = arith.constant 2 : index
    %c0_13 = arith.constant 0 : index
    %c0_14 = arith.constant 0 : index
    %41 = vector.load %arg4[%c2, %c0_13, %c0_14] : memref<9x12x512xf32, #tpu.memory_space<vmem>>, vector<1x12x512xf32>
    %42 = vector.shape_cast %41 : vector<1x12x512xf32> to vector<12x512xf32>
    %43 = arith.mulf %40, %42 : vector<12x512xf32>
    %c1_i32 = arith.constant 1 : i32
    %44 = tpu.dynamic_rotate %31 by %c1_i32 dim 1 : vector<12x512xf32>, i32 -> vector<12x512xf32>
    %c3 = arith.constant 3 : index
    %c0_15 = arith.constant 0 : index
    %c0_16 = arith.constant 0 : index
    %45 = vector.load %arg4[%c3, %c0_15, %c0_16] : memref<9x12x512xf32, #tpu.memory_space<vmem>>, vector<1x12x512xf32>
    %46 = vector.shape_cast %45 : vector<1x12x512xf32> to vector<12x512xf32>
    %47 = arith.mulf %44, %46 : vector<12x512xf32>
    %48 = arith.addf %35, %47 : vector<12x512xf32>
    %c4 = arith.constant 4 : index
    %c0_17 = arith.constant 0 : index
    %c0_18 = arith.constant 0 : index
    %49 = vector.load %arg4[%c4, %c0_17, %c0_18] : memref<9x12x512xf32, #tpu.memory_space<vmem>>, vector<1x12x512xf32>
    %50 = vector.shape_cast %49 : vector<1x12x512xf32> to vector<12x512xf32>
    %51 = arith.mulf %31, %50 : vector<12x512xf32>
    %52 = arith.addf %39, %51 : vector<12x512xf32>
    %c511_i32 = arith.constant 511 : i32
    %53 = tpu.dynamic_rotate %31 by %c511_i32 dim 1 : vector<12x512xf32>, i32 -> vector<12x512xf32>
    %c5 = arith.constant 5 : index
    %c0_19 = arith.constant 0 : index
    %c0_20 = arith.constant 0 : index
    %54 = vector.load %arg4[%c5, %c0_19, %c0_20] : memref<9x12x512xf32, #tpu.memory_space<vmem>>, vector<1x12x512xf32>
    %55 = vector.shape_cast %54 : vector<1x12x512xf32> to vector<12x512xf32>
    %56 = arith.mulf %53, %55 : vector<12x512xf32>
    %57 = arith.addf %43, %56 : vector<12x512xf32>
    %c497_i32 = arith.constant 497 : i32
    %58 = tpu.dynamic_rotate %31 by %c497_i32 dim 1 : vector<12x512xf32>, i32 -> vector<12x512xf32>
    %c6 = arith.constant 6 : index
    %c0_21 = arith.constant 0 : index
    %c0_22 = arith.constant 0 : index
    %59 = vector.load %arg4[%c6, %c0_21, %c0_22] : memref<9x12x512xf32, #tpu.memory_space<vmem>>, vector<1x12x512xf32>
    %60 = vector.shape_cast %59 : vector<1x12x512xf32> to vector<12x512xf32>
    %61 = arith.mulf %58, %60 : vector<12x512xf32>
    %62 = arith.addf %48, %61 : vector<12x512xf32>
    %c496_i32 = arith.constant 496 : i32
    %63 = tpu.dynamic_rotate %31 by %c496_i32 dim 1 : vector<12x512xf32>, i32 -> vector<12x512xf32>
    %c7 = arith.constant 7 : index
    %c0_23 = arith.constant 0 : index
    %c0_24 = arith.constant 0 : index
    %64 = vector.load %arg4[%c7, %c0_23, %c0_24] : memref<9x12x512xf32, #tpu.memory_space<vmem>>, vector<1x12x512xf32>
    %65 = vector.shape_cast %64 : vector<1x12x512xf32> to vector<12x512xf32>
    %66 = arith.mulf %63, %65 : vector<12x512xf32>
    %67 = arith.addf %52, %66 : vector<12x512xf32>
    %c495_i32 = arith.constant 495 : i32
    %68 = tpu.dynamic_rotate %31 by %c495_i32 dim 1 : vector<12x512xf32>, i32 -> vector<12x512xf32>
    %c8 = arith.constant 8 : index
    %c0_25 = arith.constant 0 : index
    %c0_26 = arith.constant 0 : index
    %69 = vector.load %arg4[%c8, %c0_25, %c0_26] : memref<9x12x512xf32, #tpu.memory_space<vmem>>, vector<1x12x512xf32>
    %70 = vector.shape_cast %69 : vector<1x12x512xf32> to vector<12x512xf32>
    %71 = arith.mulf %68, %70 : vector<12x512xf32>
    %72 = arith.addf %57, %71 : vector<12x512xf32>
    %73 = arith.addf %62, %67 : vector<12x512xf32>
    %74 = arith.addf %73, %72 : vector<12x512xf32>
    %c0_27 = arith.constant 0 : index
    %c0_28 = arith.constant 0 : index
    %75 = vector.load %arg5[%c0_27, %c0_28] : memref<12x1xf32, #tpu.memory_space<vmem>>, vector<12x1xf32>
    %76 = vector.broadcast %75 : vector<12x1xf32> to vector<12x512xf32>
    %77 = arith.addf %74, %76 : vector<12x512xf32>
    %cst_29 = arith.constant 0.000000e+00 : f32
    %78 = vector.broadcast %cst_29 : f32 to vector<12x512xf32>
    %79 = arith.maximumf %77, %78 : vector<12x512xf32>
    %80 = vector.extract_strided_slice %3 {offsets = [0, 0], sizes = [4, 1], strides = [1, 1]} : vector<4x12xf32> to vector<4x1xf32>
    %81 = vector.extract_strided_slice %79 {offsets = [0, 0], sizes = [1, 512], strides = [1, 1]} : vector<12x512xf32> to vector<1x512xf32>
    %82 = vector.broadcast %80 : vector<4x1xf32> to vector<4x512xf32>
    %83 = vector.broadcast %81 : vector<1x512xf32> to vector<4x512xf32>
    %84 = arith.mulf %82, %83 : vector<4x512xf32>
    %85 = vector.extract_strided_slice %3 {offsets = [0, 1], sizes = [4, 1], strides = [1, 1]} : vector<4x12xf32> to vector<4x1xf32>
    %86 = vector.extract_strided_slice %79 {offsets = [1, 0], sizes = [1, 512], strides = [1, 1]} : vector<12x512xf32> to vector<1x512xf32>
    %87 = vector.broadcast %85 : vector<4x1xf32> to vector<4x512xf32>
    %88 = vector.broadcast %86 : vector<1x512xf32> to vector<4x512xf32>
    %89 = arith.mulf %87, %88 : vector<4x512xf32>
    %90 = vector.extract_strided_slice %3 {offsets = [0, 2], sizes = [4, 1], strides = [1, 1]} : vector<4x12xf32> to vector<4x1xf32>
    %91 = vector.extract_strided_slice %79 {offsets = [2, 0], sizes = [1, 512], strides = [1, 1]} : vector<12x512xf32> to vector<1x512xf32>
    %92 = vector.broadcast %90 : vector<4x1xf32> to vector<4x512xf32>
    %93 = vector.broadcast %91 : vector<1x512xf32> to vector<4x512xf32>
    %94 = arith.mulf %92, %93 : vector<4x512xf32>
    %95 = arith.addf %84, %94 : vector<4x512xf32>
    %96 = vector.extract_strided_slice %3 {offsets = [0, 3], sizes = [4, 1], strides = [1, 1]} : vector<4x12xf32> to vector<4x1xf32>
    %97 = vector.extract_strided_slice %79 {offsets = [3, 0], sizes = [1, 512], strides = [1, 1]} : vector<12x512xf32> to vector<1x512xf32>
    %98 = vector.broadcast %96 : vector<4x1xf32> to vector<4x512xf32>
    %99 = vector.broadcast %97 : vector<1x512xf32> to vector<4x512xf32>
    %100 = arith.mulf %98, %99 : vector<4x512xf32>
    %101 = arith.addf %89, %100 : vector<4x512xf32>
    %102 = vector.extract_strided_slice %3 {offsets = [0, 4], sizes = [4, 1], strides = [1, 1]} : vector<4x12xf32> to vector<4x1xf32>
    %103 = vector.extract_strided_slice %79 {offsets = [4, 0], sizes = [1, 512], strides = [1, 1]} : vector<12x512xf32> to vector<1x512xf32>
    %104 = vector.broadcast %102 : vector<4x1xf32> to vector<4x512xf32>
    %105 = vector.broadcast %103 : vector<1x512xf32> to vector<4x512xf32>
    %106 = arith.mulf %104, %105 : vector<4x512xf32>
    %107 = arith.addf %95, %106 : vector<4x512xf32>
    %108 = vector.extract_strided_slice %3 {offsets = [0, 5], sizes = [4, 1], strides = [1, 1]} : vector<4x12xf32> to vector<4x1xf32>
    %109 = vector.extract_strided_slice %79 {offsets = [5, 0], sizes = [1, 512], strides = [1, 1]} : vector<12x512xf32> to vector<1x512xf32>
    %110 = vector.broadcast %108 : vector<4x1xf32> to vector<4x512xf32>
    %111 = vector.broadcast %109 : vector<1x512xf32> to vector<4x512xf32>
    %112 = arith.mulf %110, %111 : vector<4x512xf32>
    %113 = arith.addf %101, %112 : vector<4x512xf32>
    %114 = vector.extract_strided_slice %3 {offsets = [0, 6], sizes = [4, 1], strides = [1, 1]} : vector<4x12xf32> to vector<4x1xf32>
    %115 = vector.extract_strided_slice %79 {offsets = [6, 0], sizes = [1, 512], strides = [1, 1]} : vector<12x512xf32> to vector<1x512xf32>
    %116 = vector.broadcast %114 : vector<4x1xf32> to vector<4x512xf32>
    %117 = vector.broadcast %115 : vector<1x512xf32> to vector<4x512xf32>
    %118 = arith.mulf %116, %117 : vector<4x512xf32>
    %119 = arith.addf %107, %118 : vector<4x512xf32>
    %120 = vector.extract_strided_slice %3 {offsets = [0, 7], sizes = [4, 1], strides = [1, 1]} : vector<4x12xf32> to vector<4x1xf32>
    %121 = vector.extract_strided_slice %79 {offsets = [7, 0], sizes = [1, 512], strides = [1, 1]} : vector<12x512xf32> to vector<1x512xf32>
    %122 = vector.broadcast %120 : vector<4x1xf32> to vector<4x512xf32>
    %123 = vector.broadcast %121 : vector<1x512xf32> to vector<4x512xf32>
    %124 = arith.mulf %122, %123 : vector<4x512xf32>
    %125 = arith.addf %113, %124 : vector<4x512xf32>
    %126 = vector.extract_strided_slice %3 {offsets = [0, 8], sizes = [4, 1], strides = [1, 1]} : vector<4x12xf32> to vector<4x1xf32>
    %127 = vector.extract_strided_slice %79 {offsets = [8, 0], sizes = [1, 512], strides = [1, 1]} : vector<12x512xf32> to vector<1x512xf32>
    %128 = vector.broadcast %126 : vector<4x1xf32> to vector<4x512xf32>
    %129 = vector.broadcast %127 : vector<1x512xf32> to vector<4x512xf32>
    %130 = arith.mulf %128, %129 : vector<4x512xf32>
    %131 = arith.addf %119, %130 : vector<4x512xf32>
    %132 = vector.extract_strided_slice %3 {offsets = [0, 9], sizes = [4, 1], strides = [1, 1]} : vector<4x12xf32> to vector<4x1xf32>
    %133 = vector.extract_strided_slice %79 {offsets = [9, 0], sizes = [1, 512], strides = [1, 1]} : vector<12x512xf32> to vector<1x512xf32>
    %134 = vector.broadcast %132 : vector<4x1xf32> to vector<4x512xf32>
    %135 = vector.broadcast %133 : vector<1x512xf32> to vector<4x512xf32>
    %136 = arith.mulf %134, %135 : vector<4x512xf32>
    %137 = arith.addf %125, %136 : vector<4x512xf32>
    %138 = vector.extract_strided_slice %3 {offsets = [0, 10], sizes = [4, 1], strides = [1, 1]} : vector<4x12xf32> to vector<4x1xf32>
    %139 = vector.extract_strided_slice %79 {offsets = [10, 0], sizes = [1, 512], strides = [1, 1]} : vector<12x512xf32> to vector<1x512xf32>
    %140 = vector.broadcast %138 : vector<4x1xf32> to vector<4x512xf32>
    %141 = vector.broadcast %139 : vector<1x512xf32> to vector<4x512xf32>
    %142 = arith.mulf %140, %141 : vector<4x512xf32>
    %143 = arith.addf %131, %142 : vector<4x512xf32>
    %144 = vector.extract_strided_slice %3 {offsets = [0, 11], sizes = [4, 1], strides = [1, 1]} : vector<4x12xf32> to vector<4x1xf32>
    %145 = vector.extract_strided_slice %79 {offsets = [11, 0], sizes = [1, 512], strides = [1, 1]} : vector<12x512xf32> to vector<1x512xf32>
    %146 = vector.broadcast %144 : vector<4x1xf32> to vector<4x512xf32>
    %147 = vector.broadcast %145 : vector<1x512xf32> to vector<4x512xf32>
    %148 = arith.mulf %146, %147 : vector<4x512xf32>
    %149 = arith.addf %137, %148 : vector<4x512xf32>
    %150 = arith.addf %143, %149 : vector<4x512xf32>
    %c0_30 = arith.constant 0 : index
    %c0_31 = arith.constant 0 : index
    %151 = vector.load %arg7[%c0_30, %c0_31] : memref<4x1xf32, #tpu.memory_space<vmem>>, vector<4x1xf32>
    %152 = vector.broadcast %151 : vector<4x1xf32> to vector<4x512xf32>
    %153 = arith.addf %150, %152 : vector<4x512xf32>
    %154 = arith.addf %153, %1 : vector<4x512xf32>
    %c0_32 = arith.constant 0 : index
    %c0_33 = arith.constant 0 : index
    %c0_34 = arith.constant 0 : index
    %155 = vector.load %arg8[%c0_32, %c0_33, %c0_34] : memref<1x4x512xf32, #tpu.memory_space<vmem>>, vector<1x4x512xf32>
    %156 = vector.shape_cast %155 : vector<1x4x512xf32> to vector<4x512xf32>
    %157 = vector.shape_cast %154 : vector<4x512xf32> to vector<1x4x512xf32>
    tpu.vector_store %arg8[%c0_32, %c0_33, %c0_34], %157 {strides = array<i32>} : memref<1x4x512xf32, #tpu.memory_space<vmem>>, vector<1x4x512xf32>,
    return
  }
  func.func @transform_0(%arg0: i32) -> (i32, i32, i32) {
    %c0_i32 = arith.constant 0 : i32
    %c0_i32_0 = arith.constant 0 : i32
    %c0_i32_1 = arith.constant 0 : i32
    return %arg0, %c0_i32, %c0_i32_0 : i32, i32, i32
  }
  func.func @transform_1(%arg0: i32) -> (i32, i32) {
    %c0_i32 = arith.constant 0 : i32
    %c0_i32_0 = arith.constant 0 : i32
    %c0_i32_1 = arith.constant 0 : i32
    return %c0_i32, %c0_i32_0 : i32, i32
  }
  func.func @transform_2(%arg0: i32) -> (i32, i32) {
    %c0_i32 = arith.constant 0 : i32
    %c0_i32_0 = arith.constant 0 : i32
    %c0_i32_1 = arith.constant 0 : i32
    return %c0_i32, %c0_i32_0 : i32, i32
  }
  func.func @transform_3(%arg0: i32) -> (i32, i32, i32) {
    %c0_i32 = arith.constant 0 : i32
    %c0_i32_0 = arith.constant 0 : i32
    %c0_i32_1 = arith.constant 0 : i32
    %c0_i32_2 = arith.constant 0 : i32
    return %c0_i32, %c0_i32_0, %c0_i32_1 : i32, i32, i32
  }
  func.func @transform_4(%arg0: i32) -> (i32, i32) {
    %c0_i32 = arith.constant 0 : i32
    %c0_i32_0 = arith.constant 0 : i32
    %c0_i32_1 = arith.constant 0 : i32
    return %c0_i32, %c0_i32_0 : i32, i32
  }
  func.func @transform_5(%arg0: i32) -> (i32, i32) {
    %c0_i32 = arith.constant 0 : i32
    %c0_i32_0 = arith.constant 0 : i32
    %c0_i32_1 = arith.constant 0 : i32
    return %c0_i32, %c0_i32_0 : i32, i32
  }
  func.func @transform_6(%arg0: i32) -> (i32, i32) {
    %c0_i32 = arith.constant 0 : i32
    %c0_i32_0 = arith.constant 0 : i32
    %c0_i32_1 = arith.constant 0 : i32
    return %c0_i32, %c0_i32_0 : i32, i32
  }
  func.func @transform_7(%arg0: i32) -> (i32, i32, i32) {
    %c0_i32 = arith.constant 0 : i32
    %c0_i32_0 = arith.constant 0 : i32
    %c0_i32_1 = arith.constant 0 : i32
    return %arg0, %c0_i32, %c0_i32_0 : i32, i32, i32
  }
}

</mosaic_0001>

<llo_original>
// kernel: tpu_custom_call.1
$region0: #{tpu_custom_call.1}
  #allocation0 [shape = 'u32[]', space=smem, size = 0x4, offset = 0x4, fixed_abs, tag = 'smem constant byte address 0x4 - core index']
  #allocation1 [shape = 'u32[144,128]{1,0:T(1,128)}', space=vmem, size = 0x12000, scoped, tag = 'internal scratch']
  %s0 = inlined_call_operand.vmem [shape: f32[1,4,512], index: 0, kind: input, shape index: {}]
  %s1 = inlined_call_operand.vmem [shape: f32[12,4], index: 1, kind: input, shape index: {}]
  %s2 = inlined_call_operand.vmem [shape: f32[12,1], index: 2, kind: input, shape index: {}]
  %s3 = inlined_call_operand.hbm [shape: f32[9,12,512], index: 3, kind: input, shape index: {}]
  %s4 = inlined_call_operand.vmem [shape: f32[12,1], index: 4, kind: input, shape index: {}]
  %s5 = inlined_call_operand.vmem [shape: f32[4,12], index: 5, kind: input, shape index: {}]
  %s6 = inlined_call_operand.vmem [shape: f32[4,1], index: 6, kind: input, shape index: {}]
  %s7 = inlined_call_operand.hbm [shape: f32[1,4,512], index: 7, kind: output, shape index: {}]
  %s8 = sld [smem:[#allocation0]]
  $region42: #{tpu_custom_call.1} parent=0
    _
  %s10 = ssub.s32 1, %s8
  %s11 = scalar_select 0, %s10, %s8
  $region1: #{tpu_custom_call.1} parent=0
    #allocation2 [shape = 'u8[294912]{0}', space=vmem, size = 0x48000, scoped, tag = 'input window, operand 3, single buffered']
    #allocation3 [shape = 's32[1]{0}', space=sflag, size = 0x4, scoped, tag = 'scoped memory for tpu_custom_call.1']
    #allocation4 [shape = 's32[1]{0}', space=sflag, size = 0x4, scoped, tag = 'scoped memory for tpu_custom_call.1']
    #allocation5 [shape = 'u8[8192]{0}', space=vmem, size = 0x2000, scoped, tag = 'output window, operand 0, single buffered']
    %12 = vsyncpa [#allocation3], 0
    %13 = vsyncpa [#allocation4], 0
    // Predicated region
    $region2: #{tpu_custom_call.1} parent=1 // pred_check
      _
    $region3: #{tpu_custom_call.1} parent=1 // pred_check_branch
      %15 = sbr.rel (0) target = $region5
    $region4: #{tpu_custom_call.1} parent=1 // pred_region
      _
    $region5: #{tpu_custom_call.1} parent=1 // pred_fallthru
      _
    // Predicated region
    $region6: #{tpu_custom_call.1} parent=1 // pred_check
      _
    $region7: #{tpu_custom_call.1} parent=1 // pred_check_branch
      %17 = sbr.rel (0) target = $region9
    $region8: #{tpu_custom_call.1} parent=1 // pred_region
      _
    $region9: #{tpu_custom_call.1} parent=1 // pred_fallthru
      _
    // Predicated region
    $region10: #{tpu_custom_call.1} parent=1 // pred_check
      _
    $region11: #{tpu_custom_call.1} parent=1 // pred_check_branch
      %19 = sbr.rel (0) target = $region13
    $region12: #{tpu_custom_call.1} parent=1 // pred_region
      _
    $region13: #{tpu_custom_call.1} parent=1 // pred_fallthru
      _
    // Predicated region
    $region14: #{tpu_custom_call.1} parent=1 // pred_check
      _
    $region15: #{tpu_custom_call.1} parent=1 // pred_check_branch
      %21 = sbr.rel (0) target = $region17
    $region16: #{tpu_custom_call.1} parent=1 // pred_region
      %s23 = ssub.s32 9216, 9216
      %24 = vsyncadd [#allocation3], %s23
      %s25 = sshll.u32 [#allocation2], 4
      %s26 = int_to_ptr.vmem [resolvable:$true] %s25
      %31 = dma.hbm_to_vmem [thread:$0]  %s3, 9216, %s26, [#allocation3], 512, 512, 32
    $region17: #{tpu_custom_call.1} parent=1 // pred_fallthru
      _
    // Predicated region
    $region18: #{tpu_custom_call.1} parent=1 // pred_check
      _
    $region19: #{tpu_custom_call.1} parent=1 // pred_check_branch
      %33 = sbr.rel (0) target = $region21
    $region20: #{tpu_custom_call.1} parent=1 // pred_region
      _
    $region21: #{tpu_custom_call.1} parent=1 // pred_fallthru
      _
    // Predicated region
    $region22: #{tpu_custom_call.1} parent=1 // pred_check
      _
    $region23: #{tpu_custom_call.1} parent=1 // pred_check_branch
      %35 = sbr.rel (0) target = $region25
    $region24: #{tpu_custom_call.1} parent=1 // pred_region
      _
    $region25: #{tpu_custom_call.1} parent=1 // pred_fallthru
      _
    // Predicated region
    $region26: #{tpu_custom_call.1} parent=1 // pred_check
      _
    $region27: #{tpu_custom_call.1} parent=1 // pred_check_branch
      %37 = sbr.rel (0) target = $region29
    $region28: #{tpu_custom_call.1} parent=1 // pred_region
      _
    $region29: #{tpu_custom_call.1} parent=1 // pred_fallthru
      _
    // Predicated region
    $region30: #{tpu_custom_call.1} parent=1 // pred_check
      _
    $region31: #{tpu_custom_call.1} parent=1 // pred_check_branch
      %39 = sbr.rel (0) target = $region33
    $region32: #{tpu_custom_call.1} parent=1 // pred_region
      %40 = dma.done [#allocation3], 9216
    $region33: #{tpu_custom_call.1} parent=1 // pred_fallthru
      _
    %v41 = vld [vmem:[%s0] sm:$0xff]
    %v42 = vld [vmem:[%s0 + $0x8] sm:$0xff]
    %v43 = vld [vmem:[%s1] sm:$0xff]
    %v44 = vld [vmem:[%s1 + $0x8] sm:$0xf]
    %v45 = vld [vmem:[%s5] sm:$0xf]
    %47 = vset.pattern.permute.xlu0 0
    %48 = vperm.xlu0 %47, %v43
    %v49 = vpop.permute.xlu0 %48
    %52 = vset.pattern.permute.xlu0 0
    %53 = vperm.xlu0 %52, %v44
    %v54 = vpop.permute.xlu0 %53
    %v58 = vlaneseq
    %v59 = vshrl.u32 %v58, 7
    %v60 = vsub.s32 0, %v59
    %v61 = vrot.slane %v41, %v60
    %v62 = vlaneseq
    %v63 = vshrl.u32 %v62, 7
    %v64 = vsub.s32 4, %v63
    %v65 = vrot.slane %v41, %v64
    %v66 = vlaneseq
    %v67 = vshrl.u32 %v66, 7
    %v68 = vsub.s32 0, %v67
    %v69 = vrot.slane %v42, %v68
    %v70 = vlaneseq
    %v71 = vshrl.u32 %v70, 7
    %v72 = vsub.s32 4, %v71
    %v73 = vrot.slane %v42, %v72
    %v78 = vlaneseq
    %v79 = vshrl.u32 %v78, 7
    %v80 = vsub.s32 0, %v79
    %v81 = vrot.slane %v61, %v80
    %v82 = vlaneseq
    %v83 = vshrl.u32 %v82, 7
    %v84 = vsub.s32 0, %v83
    %v85 = vrot.slane %v65, %v84
    %v86 = vlaneseq
    %v87 = vshrl.u32 %v86, 7
    %v88 = vsub.s32 0, %v87
    %v89 = vrot.slane %v69, %v88
    %v90 = vlaneseq
    %v91 = vshrl.u32 %v90, 7
    %v92 = vsub.s32 0, %v91
    %v93 = vrot.slane %v73, %v92
    %v94 = vmul.f32 %v49, %v81
    %v95 = vmul.f32 %v49, %v85
    %v96 = vmul.f32 %v49, %v89
    %v97 = vmul.f32 %v49, %v93
    %v98 = vmul.f32 %v54, %v81
    %v99 = vmul.f32 %v54, %v85
    %v100 = vmul.f32 %v54, %v89
    %v101 = vmul.f32 %v54, %v93
    %102 = vset.pattern.permute.xlu0 1
    %103 = vperm.xlu0 %102, %v43
    %v104 = vpop.permute.xlu0 %103
    %106 = vset.pattern.permute.xlu0 1
    %107 = vperm.xlu0 %106, %v44
    %v108 = vpop.permute.xlu0 %107
    %v110 = vlaneseq
    %v111 = vshrl.u32 %v110, 7
    %v112 = vsub.s32 1, %v111
    %v113 = vrot.slane %v41, %v112
    %v114 = vlaneseq
    %v115 = vshrl.u32 %v114, 7
    %v116 = vsub.s32 5, %v115
    %v117 = vrot.slane %v41, %v116
    %v118 = vlaneseq
    %v119 = vshrl.u32 %v118, 7
    %v120 = vsub.s32 1, %v119
    %v121 = vrot.slane %v42, %v120
    %v122 = vlaneseq
    %v123 = vshrl.u32 %v122, 7
    %v124 = vsub.s32 5, %v123
    %v125 = vrot.slane %v42, %v124
    %v130 = vlaneseq
    %v131 = vshrl.u32 %v130, 7
    %v132 = vsub.s32 1, %v131
    %v133 = vrot.slane %v113, %v132
    %v134 = vlaneseq
    %v135 = vshrl.u32 %v134, 7
    %v136 = vsub.s32 1, %v135
    %v137 = vrot.slane %v117, %v136
    %v138 = vlaneseq
    %v139 = vshrl.u32 %v138, 7
    %v140 = vsub.s32 1, %v139
    %v141 = vrot.slane %v121, %v140
    %v142 = vlaneseq
    %v143 = vshrl.u32 %v142, 7
    %v144 = vsub.s32 1, %v143
    %v145 = vrot.slane %v125, %v144
    %v146 = vmul.f32 %v104, %v133
    %v147 = vmul.f32 %v104, %v137
    %v148 = vmul.f32 %v104, %v141
    %v149 = vmul.f32 %v104, %v145
    %v150 = vmul.f32 %v108, %v133
    %v151 = vmul.f32 %v108, %v137
    %v152 = vmul.f32 %v108, %v141
    %v153 = vmul.f32 %v108, %v145
    %154 = vset.pattern.permute.xlu0 2
    %155 = vperm.xlu0 %154, %v43
    %v156 = vpop.permute.xlu0 %155
    %158 = vset.pattern.permute.xlu0 2
    %159 = vperm.xlu0 %158, %v44
    %v160 = vpop.permute.xlu0 %159
    %v162 = vlaneseq
    %v163 = vshrl.u32 %v162, 7
    %v164 = vsub.s32 2, %v163
    %v165 = vrot.slane %v41, %v164
    %v166 = vlaneseq
    %v167 = vshrl.u32 %v166, 7
    %v168 = vsub.s32 6, %v167
    %v169 = vrot.slane %v41, %v168
    %v170 = vlaneseq
    %v171 = vshrl.u32 %v170, 7
    %v172 = vsub.s32 2, %v171
    %v173 = vrot.slane %v42, %v172
    %v174 = vlaneseq
    %v175 = vshrl.u32 %v174, 7
    %v176 = vsub.s32 6, %v175
    %v177 = vrot.slane %v42, %v176
    %v182 = vlaneseq
    %v183 = vshrl.u32 %v182, 7
    %v184 = vsub.s32 2, %v183
    %v185 = vrot.slane %v165, %v184
    %v186 = vlaneseq
    %v187 = vshrl.u32 %v186, 7
    %v188 = vsub.s32 2, %v187
    %v189 = vrot.slane %v169, %v188
    %v190 = vlaneseq
    %v191 = vshrl.u32 %v190, 7
    %v192 = vsub.s32 2, %v191
    %v193 = vrot.slane %v173, %v192
    %v194 = vlaneseq
    %v195 = vshrl.u32 %v194, 7
    %v196 = vsub.s32 2, %v195
    %v197 = vrot.slane %v177, %v196
    %v198 = vmul.f32 %v156, %v185
    %v199 = vmul.f32 %v156, %v189
    %v200 = vmul.f32 %v156, %v193
    %v201 = vmul.f32 %v156, %v197
    %v202 = vmul.f32 %v160, %v185
    %v203 = vmul.f32 %v160, %v189
    %v204 = vmul.f32 %v160, %v193
    %v205 = vmul.f32 %v160, %v197
    %v206 = vadd.f32 %v94, %v198
    %v207 = vadd.f32 %v95, %v199
    %v208 = vadd.f32 %v96, %v200
    %v209 = vadd.f32 %v97, %v201
    %v210 = vadd.f32 %v98, %v202
    %v211 = vadd.f32 %v99, %v203
    %v212 = vadd.f32 %v100, %v204
    %v213 = vadd.f32 %v101, %v205
    %214 = vset.pattern.permute.xlu0 3
    %215 = vperm.xlu0 %214, %v43
    %v216 = vpop.permute.xlu0 %215
    %218 = vset.pattern.permute.xlu0 3
    %219 = vperm.xlu0 %218, %v44
    %v220 = vpop.permute.xlu0 %219
    %v222 = vlaneseq
    %v223 = vshrl.u32 %v222, 7
    %v224 = vsub.s32 3, %v223
    %v225 = vrot.slane %v41, %v224
    %v226 = vlaneseq
    %v227 = vshrl.u32 %v226, 7
    %v228 = vsub.s32 7, %v227
    %v229 = vrot.slane %v41, %v228
    %v230 = vlaneseq
    %v231 = vshrl.u32 %v230, 7
    %v232 = vsub.s32 3, %v231
    %v233 = vrot.slane %v42, %v232
    %v234 = vlaneseq
    %v235 = vshrl.u32 %v234, 7
    %v236 = vsub.s32 7, %v235
    %v237 = vrot.slane %v42, %v236
    %v242 = vlaneseq
    %v243 = vshrl.u32 %v242, 7
    %v244 = vsub.s32 3, %v243
    %v245 = vrot.slane %v225, %v244
    %v246 = vlaneseq
    %v247 = vshrl.u32 %v246, 7
    %v248 = vsub.s32 3, %v247
    %v249 = vrot.slane %v229, %v248
    %v250 = vlaneseq
    %v251 = vshrl.u32 %v250, 7
    %v252 = vsub.s32 3, %v251
    %v253 = vrot.slane %v233, %v252
    %v254 = vlaneseq
    %v255 = vshrl.u32 %v254, 7
    %v256 = vsub.s32 3, %v255
    %v257 = vrot.slane %v237, %v256
    %v258 = vmul.f32 %v216, %v245
    %v259 = vmul.f32 %v216, %v249
    %v260 = vmul.f32 %v216, %v253
    %v261 = vmul.f32 %v216, %v257
    %v262 = vmul.f32 %v220, %v245
    %v263 = vmul.f32 %v220, %v249
    %v264 = vmul.f32 %v220, %v253
    %v265 = vmul.f32 %v220, %v257
    %v266 = vadd.f32 %v146, %v258
    %v267 = vadd.f32 %v147, %v259
    %v268 = vadd.f32 %v148, %v260
    %v269 = vadd.f32 %v149, %v261
    %v270 = vadd.f32 %v150, %v262
    %v271 = vadd.f32 %v151, %v263
    %v272 = vadd.f32 %v152, %v264
    %v273 = vadd.f32 %v153, %v265
    %v274 = vadd.f32 %v206, %v266
    %v275 = vadd.f32 %v207, %v267
    %v276 = vadd.f32 %v208, %v268
    %v277 = vadd.f32 %v209, %v269
    %v278 = vadd.f32 %v210, %v270
    %v279 = vadd.f32 %v211, %v271
    %v280 = vadd.f32 %v212, %v272
    %v281 = vadd.f32 %v213, %v273
    %v282 = vld [vmem:[%s2] sm:$0xff]
    %v283 = vld [vmem:[%s2 + $0x8] sm:$0xf]
    %285 = vset.pattern.permute.xlu0 0
    %286 = vperm.xlu0 %285, %v282
    %v287 = vpop.permute.xlu0 %286
    %290 = vset.pattern.permute.xlu0 0
    %291 = vperm.xlu0 %290, %v283
    %v292 = vpop.permute.xlu0 %291
    %v294 = vadd.f32 %v274, %v287
    %v295 = vadd.f32 %v275, %v287
    %v296 = vadd.f32 %v276, %v287
    %v297 = vadd.f32 %v277, %v287
    %v298 = vadd.f32 %v278, %v292
    %v299 = vadd.f32 %v279, %v292
    %v300 = vadd.f32 %v280, %v292
    %v301 = vadd.f32 %v281, %v292
    %v302 = vmax.f32 %v294, 0.0
    %v303 = vmax.f32 %v295, 0.0
    %v304 = vmax.f32 %v296, 0.0
    %v305 = vmax.f32 %v297, 0.0
    %v306 = vmax.f32 %v298, 0.0
    %v307 = vmax.f32 %v299, 0.0
    %v308 = vmax.f32 %v300, 0.0
    %v309 = vmax.f32 %v301, 0.0
    %310 = vrot.lane.b32.xlu0 %v302, 17
    %v311 = vpop.permute.xlu0 %310
    %312 = vrot.lane.b32.xlu0 %v306, 17
    %v313 = vpop.permute.xlu0 %312
    %314 = vrot.lane.b32.xlu0 %v303, 17
    %v315 = vpop.permute.xlu0 %314
    %316 = vrot.lane.b32.xlu0 %v307, 17
    %v317 = vpop.permute.xlu0 %316
    %318 = vrot.lane.b32.xlu0 %v304, 17
    %v319 = vpop.permute.xlu0 %318
    %320 = vrot.lane.b32.xlu0 %v308, 17
    %v321 = vpop.permute.xlu0 %320
    %322 = vrot.lane.b32.xlu0 %v305, 17
    %v323 = vpop.permute.xlu0 %322
    %324 = vrot.lane.b32.xlu0 %v309, 17
    %v325 = vpop.permute.xlu0 %324
    %v326 = vlaneseq
    %v327 = vand.u32 %v326, 127
    %vm328 = vcmp.lt.s32.totalorder %v327, 17
    %v329 = vsel %vm328, %v319, %v323
    %v330 = vsel %vm328, %v321, %v325
    %v331 = vsel %vm328, %v315, %v319
    %v332 = vsel %vm328, %v317, %v321
    %v333 = vsel %vm328, %v311, %v315
    %v334 = vsel %vm328, %v313, %v317
    %v335 = vsel %vm328, %v323, %v311
    %v336 = vsel %vm328, %v325, %v313
    %v337 = vld [vmem:[#allocation2] sm:$0xff]
    %v338 = vld [vmem:[#allocation2 + $0x8] sm:$0xff]
    %v339 = vld [vmem:[#allocation2 + $0x10] sm:$0xff]
    %v340 = vld [vmem:[#allocation2 + $0x18] sm:$0xff]
    %v341 = vld [vmem:[#allocation2 + $0x20] sm:$0xf]
    %v342 = vld [vmem:[#allocation2 + $0x28] sm:$0xf]
    %v343 = vld [vmem:[#allocation2 + $0x30] sm:$0xf]
    %v344 = vld [vmem:[#allocation2 + $0x38] sm:$0xf]
    %v345 = vmul.f32 %v335, %v337
    %v346 = vmul.f32 %v333, %v338
    %v347 = vmul.f32 %v331, %v339
    %v348 = vmul.f32 %v329, %v340
    %v349 = vmul.f32 %v336, %v341
    %v350 = vmul.f32 %v334, %v342
    %v351 = vmul.f32 %v332, %v343
    %v352 = vmul.f32 %v330, %v344
    %353 = vrot.lane.b32.xlu0 %v302, 16
    %v354 = vpop.permute.xlu0 %353
    %355 = vrot.lane.b32.xlu0 %v306, 16
    %v356 = vpop.permute.xlu0 %355
    %357 = vrot.lane.b32.xlu0 %v303, 16
    %v358 = vpop.permute.xlu0 %357
    %359 = vrot.lane.b32.xlu0 %v307, 16
    %v360 = vpop.permute.xlu0 %359
    %361 = vrot.lane.b32.xlu0 %v304, 16
    %v362 = vpop.permute.xlu0 %361
    %363 = vrot.lane.b32.xlu0 %v308, 16
    %v364 = vpop.permute.xlu0 %363
    %365 = vrot.lane.b32.xlu0 %v305, 16
    %v366 = vpop.permute.xlu0 %365
    %367 = vrot.lane.b32.xlu0 %v309, 16
    %v368 = vpop.permute.xlu0 %367
    %vm369 = vcmp.lt.s32.totalorder %v327, 16
    %v370 = vsel %vm369, %v362, %v366
    %v371 = vsel %vm369, %v364, %v368
    %v372 = vsel %vm369, %v358, %v362
    %v373 = vsel %vm369, %v360, %v364
    %v374 = vsel %vm369, %v354, %v358
    %v375 = vsel %vm369, %v356, %v360
    %v376 = vsel %vm369, %v366, %v354
    %v377 = vsel %vm369, %v368, %v356
    %s378 = scalar_lea.vmem [#allocation2], 64
    %v379 = vld [vmem:[%s378] sm:$0xff]
    %v380 = vld [vmem:[%s378 + $0x8] sm:$0xff]
    %v381 = vld [vmem:[%s378 + $0x10] sm:$0xff]
    %v382 = vld [vmem:[%s378 + $0x18] sm:$0xff]
    %v383 = vld [vmem:[%s378 + $0x20] sm:$0xf]
    %v384 = vld [vmem:[%s378 + $0x28] sm:$0xf]
    %v385 = vld [vmem:[%s378 + $0x30] sm:$0xf]
    %v386 = vld [vmem:[%s378 + $0x38] sm:$0xf]
    %v387 = vmul.f32 %v376, %v379
    %v388 = vmul.f32 %v374, %v380
    %v389 = vmul.f32 %v372, %v381
    %v390 = vmul.f32 %v370, %v382
    %v391 = vmul.f32 %v377, %v383
    %v392 = vmul.f32 %v375, %v384
    %v393 = vmul.f32 %v373, %v385
    %v394 = vmul.f32 %v371, %v386
    %395 = vrot.lane.b32.xlu0 %v302, 15
    %v396 = vpop.permute.xlu0 %395
    %397 = vrot.lane.b32.xlu0 %v306, 15
    %v398 = vpop.permute.xlu0 %397
    %399 = vrot.lane.b32.xlu0 %v303, 15
    %v400 = vpop.permute.xlu0 %399
    %401 = vrot.lane.b32.xlu0 %v307, 15
    %v402 = vpop.permute.xlu0 %401
    %403 = vrot.lane.b32.xlu0 %v304, 15
    %v404 = vpop.permute.xlu0 %403
    %405 = vrot.lane.b32.xlu0 %v308, 15
    %v406 = vpop.permute.xlu0 %405
    %407 = vrot.lane.b32.xlu0 %v305, 15
    %v408 = vpop.permute.xlu0 %407
    %409 = vrot.lane.b32.xlu0 %v309, 15
    %v410 = vpop.permute.xlu0 %409
    %vm411 = vcmp.lt.s32.totalorder %v327, 15
    %v412 = vsel %vm411, %v404, %v408
    %v413 = vsel %vm411, %v406, %v410
    %v414 = vsel %vm411, %v400, %v404
    %v415 = vsel %vm411, %v402, %v406
    %v416 = vsel %vm411, %v396, %v400
    %v417 = vsel %vm411, %v398, %v402
    %v418 = vsel %vm411, %v408, %v396
    %v419 = vsel %vm411, %v410, %v398
    %s420 = scalar_lea.vmem [#allocation2], 128
    %v421 = vld [vmem:[%s420] sm:$0xff]
    %v422 = vld [vmem:[%s420 + $0x8] sm:$0xff]
    %v423 = vld [vmem:[%s420 + $0x10] sm:$0xff]
    %v424 = vld [vmem:[%s420 + $0x18] sm:$0xff]
    %v425 = vld [vmem:[%s420 + $0x20] sm:$0xf]
    %v426 = vld [vmem:[%s420 + $0x28] sm:$0xf]
    %v427 = vld [vmem:[%s420 + $0x30] sm:$0xf]
    %v428 = vld [vmem:[%s420 + $0x38] sm:$0xf]
    %v429 = vmul.f32 %v418, %v421
    %v430 = vmul.f32 %v416, %v422
    %v431 = vmul.f32 %v414, %v423
    %v432 = vmul.f32 %v412, %v424
    %v433 = vmul.f32 %v419, %v425
    %v434 = vmul.f32 %v417, %v426
    %v435 = vmul.f32 %v415, %v427
    %v436 = vmul.f32 %v413, %v428
    %437 = vrot.lane.b32.xlu0 %v302, 1
    %v438 = vpop.permute.xlu0 %437
    %439 = vrot.lane.b32.xlu0 %v306, 1
    %v440 = vpop.permute.xlu0 %439
    %441 = vrot.lane.b32.xlu0 %v303, 1
    %v442 = vpop.permute.xlu0 %441
    %443 = vrot.lane.b32.xlu0 %v307, 1
    %v444 = vpop.permute.xlu0 %443
    %445 = vrot.lane.b32.xlu0 %v304, 1
    %v446 = vpop.permute.xlu0 %445
    %447 = vrot.lane.b32.xlu0 %v308, 1
    %v448 = vpop.permute.xlu0 %447
    %449 = vrot.lane.b32.xlu0 %v305, 1
    %v450 = vpop.permute.xlu0 %449
    %451 = vrot.lane.b32.xlu0 %v309, 1
    %v452 = vpop.permute.xlu0 %451
    %vm453 = vcmp.lt.s32.totalorder %v327, 1
    %v454 = vsel %vm453, %v446, %v450
    %v455 = vsel %vm453, %v448, %v452
    %v456 = vsel %vm453, %v442, %v446
    %v457 = vsel %vm453, %v444, %v448
    %v458 = vsel %vm453, %v438, %v442
    %v459 = vsel %vm453, %v440, %v444
    %v460 = vsel %vm453, %v450, %v438
    %v461 = vsel %vm453, %v452, %v440
    %s462 = scalar_lea.vmem [#allocation2], 192
    %v463 = vld [vmem:[%s462] sm:$0xff]
    %v464 = vld [vmem:[%s462 + $0x8] sm:$0xff]
    %v465 = vld [vmem:[%s462 + $0x10] sm:$0xff]
    %v466 = vld [vmem:[%s462 + $0x18] sm:$0xff]
    %v467 = vld [vmem:[%s462 + $0x20] sm:$0xf]
    %v468 = vld [vmem:[%s462 + $0x28] sm:$0xf]
    %v469 = vld [vmem:[%s462 + $0x30] sm:$0xf]
    %v470 = vld [vmem:[%s462 + $0x38] sm:$0xf]
    %v471 = vmul.f32 %v460, %v463
    %v472 = vmul.f32 %v458, %v464
    %v473 = vmul.f32 %v456, %v465
    %v474 = vmul.f32 %v454, %v466
    %v475 = vmul.f32 %v461, %v467
    %v476 = vmul.f32 %v459, %v468
    %v477 = vmul.f32 %v457, %v469
    %v478 = vmul.f32 %v455, %v470
    %v479 = vadd.f32 %v345, %v471
    %v480 = vadd.f32 %v346, %v472
    %v481 = vadd.f32 %v347, %v473
    %v482 = vadd.f32 %v348, %v474
    %v483 = vadd.f32 %v349, %v475
    %v484 = vadd.f32 %v350, %v476
    %v485 = vadd.f32 %v351, %v477
    %v486 = vadd.f32 %v352, %v478
    %s487 = scalar_lea.vmem [#allocation2], 256
    %v488 = vld [vmem:[%s487] sm:$0xff]
    %v489 = vld [vmem:[%s487 + $0x8] sm:$0xff]
    %v490 = vld [vmem:[%s487 + $0x10] sm:$0xff]
    %v491 = vld [vmem:[%s487 + $0x18] sm:$0xff]
    %v492 = vld [vmem:[%s487 + $0x20] sm:$0xf]
    %v493 = vld [vmem:[%s487 + $0x28] sm:$0xf]
    %v494 = vld [vmem:[%s487 + $0x30] sm:$0xf]
    %v495 = vld [vmem:[%s487 + $0x38] sm:$0xf]
    %v496 = vmul.f32 %v302, %v488
    %v497 = vmul.f32 %v303, %v489
    %v498 = vmul.f32 %v304, %v490
    %v499 = vmul.f32 %v305, %v491
    %v500 = vmul.f32 %v306, %v492
    %v501 = vmul.f32 %v307, %v493
    %v502 = vmul.f32 %v308, %v494
    %v503 = vmul.f32 %v309, %v495
    %v504 = vadd.f32 %v387, %v496
    %v505 = vadd.f32 %v388, %v497
    %v506 = vadd.f32 %v389, %v498
    %v507 = vadd.f32 %v390, %v499
    %v508 = vadd.f32 %v391, %v500
    %v509 = vadd.f32 %v392, %v501
    %v510 = vadd.f32 %v393, %v502
    %v511 = vadd.f32 %v394, %v503
    %512 = vrot.lane.b32.xlu0 %v302, 127
    %v513 = vpop.permute.xlu0 %512
    %514 = vrot.lane.b32.xlu0 %v306, 127
    %v515 = vpop.permute.xlu0 %514
    %516 = vrot.lane.b32.xlu0 %v303, 127
    %v517 = vpop.permute.xlu0 %516
    %518 = vrot.lane.b32.xlu0 %v307, 127
    %v519 = vpop.permute.xlu0 %518
    %520 = vrot.lane.b32.xlu0 %v304, 127
    %v521 = vpop.permute.xlu0 %520
    %522 = vrot.lane.b32.xlu0 %v308, 127
    %v523 = vpop.permute.xlu0 %522
    %524 = vrot.lane.b32.xlu0 %v305, 127
    %v525 = vpop.permute.xlu0 %524
    %526 = vrot.lane.b32.xlu0 %v309, 127
    %v527 = vpop.permute.xlu0 %526
    %vm528 = vcmp.lt.s32.totalorder %v327, 127
    %v529 = vsel %vm528, %v521, %v525
    %v530 = vsel %vm528, %v523, %v527
    %v531 = vsel %vm528, %v517, %v521
    %v532 = vsel %vm528, %v519, %v523
    %v533 = vsel %vm528, %v513, %v517
    %v534 = vsel %vm528, %v515, %v519
    %v535 = vsel %vm528, %v525, %v513
    %v536 = vsel %vm528, %v527, %v515
    %s537 = scalar_lea.vmem [#allocation2], 320
    %v538 = vld [vmem:[%s537] sm:$0xff]
    %v539 = vld [vmem:[%s537 + $0x8] sm:$0xff]
    %v540 = vld [vmem:[%s537 + $0x10] sm:$0xff]
    %v541 = vld [vmem:[%s537 + $0x18] sm:$0xff]
    %v542 = vld [vmem:[%s537 + $0x20] sm:$0xf]
    %v543 = vld [vmem:[%s537 + $0x28] sm:$0xf]
    %v544 = vld [vmem:[%s537 + $0x30] sm:$0xf]
    %v545 = vld [vmem:[%s537 + $0x38] sm:$0xf]
    %v546 = vmul.f32 %v533, %v538
    %v547 = vmul.f32 %v531, %v539
    %v548 = vmul.f32 %v529, %v540
    %v549 = vmul.f32 %v535, %v541
    %v550 = vmul.f32 %v534, %v542
    %v551 = vmul.f32 %v532, %v543
    %v552 = vmul.f32 %v530, %v544
    %v553 = vmul.f32 %v536, %v545
    %v554 = vadd.f32 %v429, %v546
    %v555 = vadd.f32 %v430, %v547
    %v556 = vadd.f32 %v431, %v548
    %v557 = vadd.f32 %v432, %v549
    %v558 = vadd.f32 %v433, %v550
    %v559 = vadd.f32 %v434, %v551
    %v560 = vadd.f32 %v435, %v552
    %v561 = vadd.f32 %v436, %v553
    %562 = vrot.lane.b32.xlu0 %v302, 113
    %v563 = vpop.permute.xlu0 %562
    %564 = vrot.lane.b32.xlu0 %v306, 113
    %v565 = vpop.permute.xlu0 %564
    %566 = vrot.lane.b32.xlu0 %v303, 113
    %v567 = vpop.permute.xlu0 %566
    %568 = vrot.lane.b32.xlu0 %v307, 113
    %v569 = vpop.permute.xlu0 %568
    %570 = vrot.lane.b32.xlu0 %v304, 113
    %v571 = vpop.permute.xlu0 %570
    %572 = vrot.lane.b32.xlu0 %v308, 113
    %v573 = vpop.permute.xlu0 %572
    %574 = vrot.lane.b32.xlu0 %v305, 113
    %v575 = vpop.permute.xlu0 %574
    %576 = vrot.lane.b32.xlu0 %v309, 113
    %v577 = vpop.permute.xlu0 %576
    %vm578 = vcmp.lt.s32.totalorder %v327, 113
    %v579 = vsel %vm578, %v571, %v575
    %v580 = vsel %vm578, %v573, %v577
    %v581 = vsel %vm578, %v567, %v571
    %v582 = vsel %vm578, %v569, %v573
    %v583 = vsel %vm578, %v563, %v567
    %v584 = vsel %vm578, %v565, %v569
    %v585 = vsel %vm578, %v575, %v563
    %v586 = vsel %vm578, %v577, %v565
    %s587 = scalar_lea.vmem [#allocation2], 384
    %v588 = vld [vmem:[%s587] sm:$0xff]
    %v589 = vld [vmem:[%s587 + $0x8] sm:$0xff]
    %v590 = vld [vmem:[%s587 + $0x10] sm:$0xff]
    %v591 = vld [vmem:[%s587 + $0x18] sm:$0xff]
    %v592 = vld [vmem:[%s587 + $0x20] sm:$0xf]
    %v593 = vld [vmem:[%s587 + $0x28] sm:$0xf]
    %v594 = vld [vmem:[%s587 + $0x30] sm:$0xf]
    %v595 = vld [vmem:[%s587 + $0x38] sm:$0xf]
    %v596 = vmul.f32 %v583, %v588
    %v597 = vmul.f32 %v581, %v589
    %v598 = vmul.f32 %v579, %v590
    %v599 = vmul.f32 %v585, %v591
    %v600 = vmul.f32 %v584, %v592
    %v601 = vmul.f32 %v582, %v593
    %v602 = vmul.f32 %v580, %v594
    %v603 = vmul.f32 %v586, %v595
    %v604 = vadd.f32 %v479, %v596
    %v605 = vadd.f32 %v480, %v597
    %v606 = vadd.f32 %v481, %v598
    %v607 = vadd.f32 %v482, %v599
    %v608 = vadd.f32 %v483, %v600
    %v609 = vadd.f32 %v484, %v601
    %v610 = vadd.f32 %v485, %v602
    %v611 = vadd.f32 %v486, %v603
    %612 = vrot.lane.b32.xlu0 %v302, 112
    %v613 = vpop.permute.xlu0 %612
    %614 = vrot.lane.b32.xlu0 %v306, 112
    %v615 = vpop.permute.xlu0 %614
    %616 = vrot.lane.b32.xlu0 %v303, 112
    %v617 = vpop.permute.xlu0 %616
    %618 = vrot.lane.b32.xlu0 %v307, 112
    %v619 = vpop.permute.xlu0 %618
    %620 = vrot.lane.b32.xlu0 %v304, 112
    %v621 = vpop.permute.xlu0 %620
    %622 = vrot.lane.b32.xlu0 %v308, 112
    %v623 = vpop.permute.xlu0 %622
    %624 = vrot.lane.b32.xlu0 %v305, 112
    %v625 = vpop.permute.xlu0 %624
    %626 = vrot.lane.b32.xlu0 %v309, 112
    %v627 = vpop.permute.xlu0 %626
    %vm628 = vcmp.lt.s32.totalorder %v327, 112
    %v629 = vsel %vm628, %v621, %v625
    %v630 = vsel %vm628, %v623, %v627
    %v631 = vsel %vm628, %v617, %v621
    %v632 = vsel %vm628, %v619, %v623
    %v633 = vsel %vm628, %v613, %v617
    %v634 = vsel %vm628, %v615, %v619
    %v635 = vsel %vm628, %v625, %v613
    %v636 = vsel %vm628, %v627, %v615
    %s637 = scalar_lea.vmem [#allocation2], 448
    %v638 = vld [vmem:[%s637] sm:$0xff]
    %v639 = vld [vmem:[%s637 + $0x8] sm:$0xff]
    %v640 = vld [vmem:[%s637 + $0x10] sm:$0xff]
    %v641 = vld [vmem:[%s637 + $0x18] sm:$0xff]
    %v642 = vld [vmem:[%s637 + $0x20] sm:$0xf]
    %v643 = vld [vmem:[%s637 + $0x28] sm:$0xf]
    %v644 = vld [vmem:[%s637 + $0x30] sm:$0xf]
    %v645 = vld [vmem:[%s637 + $0x38] sm:$0xf]
    %v646 = vmul.f32 %v633, %v638
    %v647 = vmul.f32 %v631, %v639
    %v648 = vmul.f32 %v629, %v640
    %v649 = vmul.f32 %v635, %v641
    %v650 = vmul.f32 %v634, %v642
    %v651 = vmul.f32 %v632, %v643
    %v652 = vmul.f32 %v630, %v644
    %v653 = vmul.f32 %v636, %v645
    %v654 = vadd.f32 %v504, %v646
    %v655 = vadd.f32 %v505, %v647
    %v656 = vadd.f32 %v506, %v648
    %v657 = vadd.f32 %v507, %v649
    %v658 = vadd.f32 %v508, %v650
    %v659 = vadd.f32 %v509, %v651
    %v660 = vadd.f32 %v510, %v652
    %v661 = vadd.f32 %v511, %v653
    %662 = vrot.lane.b32.xlu0 %v302, 111
    %v663 = vpop.permute.xlu0 %662
    %664 = vrot.lane.b32.xlu0 %v306, 111
    %v665 = vpop.permute.xlu0 %664
    %666 = vrot.lane.b32.xlu0 %v303, 111
    %v667 = vpop.permute.xlu0 %666
    %668 = vrot.lane.b32.xlu0 %v307, 111
    %v669 = vpop.permute.xlu0 %668
    %670 = vrot.lane.b32.xlu0 %v304, 111
    %v671 = vpop.permute.xlu0 %670
    %672 = vrot.lane.b32.xlu0 %v308, 111
    %v673 = vpop.permute.xlu0 %672
    %674 = vrot.lane.b32.xlu0 %v305, 111
    %v675 = vpop.permute.xlu0 %674
    %676 = vrot.lane.b32.xlu0 %v309, 111
    %v677 = vpop.permute.xlu0 %676
    %vm678 = vcmp.lt.s32.totalorder %v327, 111
    %v679 = vsel %vm678, %v671, %v675
    %v680 = vsel %vm678, %v673, %v677
    %v681 = vsel %vm678, %v667, %v671
    %v682 = vsel %vm678, %v669, %v673
    %v683 = vsel %vm678, %v663, %v667
    %v684 = vsel %vm678, %v665, %v669
    %v685 = vsel %vm678, %v675, %v663
    %v686 = vsel %vm678, %v677, %v665
    %s687 = scalar_lea.vmem [#allocation2], 512
    %v688 = vld [vmem:[%s687] sm:$0xff]
    %v689 = vld [vmem:[%s687 + $0x8] sm:$0xff]
    %v690 = vld [vmem:[%s687 + $0x10] sm:$0xff]
    %v691 = vld [vmem:[%s687 + $0x18] sm:$0xff]
    %v692 = vld [vmem:[%s687 + $0x20] sm:$0xf]
    %v693 = vld [vmem:[%s687 + $0x28] sm:$0xf]
    %v694 = vld [vmem:[%s687 + $0x30] sm:$0xf]
    %v695 = vld [vmem:[%s687 + $0x38] sm:$0xf]
    %v696 = vmul.f32 %v683, %v688
    %v697 = vmul.f32 %v681, %v689
    %v698 = vmul.f32 %v679, %v690
    %v699 = vmul.f32 %v685, %v691
    %v700 = vmul.f32 %v684, %v692
    %v701 = vmul.f32 %v682, %v693
    %v702 = vmul.f32 %v680, %v694
    %v703 = vmul.f32 %v686, %v695
    %v704 = vadd.f32 %v554, %v696
    %v705 = vadd.f32 %v555, %v697
    %v706 = vadd.f32 %v556, %v698
    %v707 = vadd.f32 %v557, %v699
    %v708 = vadd.f32 %v558, %v700
    %v709 = vadd.f32 %v559, %v701
    %v710 = vadd.f32 %v560, %v702
    %v711 = vadd.f32 %v561, %v703
    %v712 = vadd.f32 %v604, %v654
    %v713 = vadd.f32 %v605, %v655
    %v714 = vadd.f32 %v606, %v656
    %v715 = vadd.f32 %v607, %v657
    %v716 = vadd.f32 %v608, %v658
    %v717 = vadd.f32 %v609, %v659
    %v718 = vadd.f32 %v610, %v660
    %v719 = vadd.f32 %v611, %v661
    %v720 = vadd.f32 %v712, %v704
    %v721 = vadd.f32 %v713, %v705
    %v722 = vadd.f32 %v714, %v706
    %v723 = vadd.f32 %v715, %v707
    %v724 = vadd.f32 %v716, %v708
    %v725 = vadd.f32 %v717, %v709
    %v726 = vadd.f32 %v718, %v710
    %v727 = vadd.f32 %v719, %v711
    %v728 = vld [vmem:[%s4] sm:$0xff]
    %v729 = vld [vmem:[%s4 + $0x8] sm:$0xf]
    %731 = vset.pattern.permute.xlu0 0
    %732 = vperm.xlu0 %731, %v728
    %v733 = vpop.permute.xlu0 %732
    %736 = vset.pattern.permute.xlu0 0
    %737 = vperm.xlu0 %736, %v729
    %v738 = vpop.permute.xlu0 %737
    %v740 = vadd.f32 %v720, %v733
    %v741 = vadd.f32 %v721, %v733
    %v742 = vadd.f32 %v722, %v733
    %v743 = vadd.f32 %v723, %v733
    %v744 = vadd.f32 %v724, %v738
    %v745 = vadd.f32 %v725, %v738
    %v746 = vadd.f32 %v726, %v738
    %v747 = vadd.f32 %v727, %v738
    %v748 = vmax.f32 %v740, 0.0
    %v749 = vmax.f32 %v741, 0.0
    %v750 = vmax.f32 %v742, 0.0
    %v751 = vmax.f32 %v743, 0.0
    %v752 = vmax.f32 %v744, 0.0
    %v753 = vmax.f32 %v745, 0.0
    %v754 = vmax.f32 %v746, 0.0
    %v755 = vmax.f32 %v747, 0.0
    %757 = vset.pattern.permute.xlu0 0
    %758 = vperm.xlu0 %757, %v45
    %v759 = vpop.permute.xlu0 %758
    %v761 = vlaneseq
    %v762 = vshrl.u32 %v761, 7
    %v763 = vsub.s32 0, %v762
    %v764 = vrot.slane %v748, %v763
    %v765 = vlaneseq
    %v766 = vshrl.u32 %v765, 7
    %v767 = vsub.s32 0, %v766
    %v768 = vrot.slane %v749, %v767
    %v769 = vlaneseq
    %v770 = vshrl.u32 %v769, 7
    %v771 = vsub.s32 0, %v770
    %v772 = vrot.slane %v750, %v771
    %v773 = vlaneseq
    %v774 = vshrl.u32 %v773, 7
    %v775 = vsub.s32 0, %v774
    %v776 = vrot.slane %v751, %v775
    %v777 = vmul.f32 %v759, %v764
    %v778 = vmul.f32 %v759, %v768
    %v779 = vmul.f32 %v759, %v772
    %v780 = vmul.f32 %v759, %v776
    %781 = vset.pattern.permute.xlu0 1
    %782 = vperm.xlu0 %781, %v45
    %v783 = vpop.permute.xlu0 %782
    %v785 = vlaneseq
    %v786 = vshrl.u32 %v785, 7
    %v787 = vsub.s32 1, %v786
    %v788 = vrot.slane %v748, %v787
    %v789 = vlaneseq
    %v790 = vshrl.u32 %v789, 7
    %v791 = vsub.s32 1, %v790
    %v792 = vrot.slane %v749, %v791
    %v793 = vlaneseq
    %v794 = vshrl.u32 %v793, 7
    %v795 = vsub.s32 1, %v794
    %v796 = vrot.slane %v750, %v795
    %v797 = vlaneseq
    %v798 = vshrl.u32 %v797, 7
    %v799 = vsub.s32 1, %v798
    %v800 = vrot.slane %v751, %v799
    %v801 = vmul.f32 %v783, %v788
    %v802 = vmul.f32 %v783, %v792
    %v803 = vmul.f32 %v783, %v796
    %v804 = vmul.f32 %v783, %v800
    %805 = vset.pattern.permute.xlu0 2
    %806 = vperm.xlu0 %805, %v45
    %v807 = vpop.permute.xlu0 %806
    %v809 = vlaneseq
    %v810 = vshrl.u32 %v809, 7
    %v811 = vsub.s32 2, %v810
    %v812 = vrot.slane %v748, %v811
    %v813 = vlaneseq
    %v814 = vshrl.u32 %v813, 7
    %v815 = vsub.s32 2, %v814
    %v816 = vrot.slane %v749, %v815
    %v817 = vlaneseq
    %v818 = vshrl.u32 %v817, 7
    %v819 = vsub.s32 2, %v818
    %v820 = vrot.slane %v750, %v819
    %v821 = vlaneseq
    %v822 = vshrl.u32 %v821, 7
    %v823 = vsub.s32 2, %v822
    %v824 = vrot.slane %v751, %v823
    %v825 = vmul.f32 %v807, %v812
    %v826 = vmul.f32 %v807, %v816
    %v827 = vmul.f32 %v807, %v820
    %v828 = vmul.f32 %v807, %v824
    %v829 = vadd.f32 %v777, %v825
    %v830 = vadd.f32 %v778, %v826
    %v831 = vadd.f32 %v779, %v827
    %v832 = vadd.f32 %v780, %v828
    %833 = vset.pattern.permute.xlu0 3
    %834 = vperm.xlu0 %833, %v45
    %v835 = vpop.permute.xlu0 %834
    %v837 = vlaneseq
    %v838 = vshrl.u32 %v837, 7
    %v839 = vsub.s32 3, %v838
    %v840 = vrot.slane %v748, %v839
    %v841 = vlaneseq
    %v842 = vshrl.u32 %v841, 7
    %v843 = vsub.s32 3, %v842
    %v844 = vrot.slane %v749, %v843
    %v845 = vlaneseq
    %v846 = vshrl.u32 %v845, 7
    %v847 = vsub.s32 3, %v846
    %v848 = vrot.slane %v750, %v847
    %v849 = vlaneseq
    %v850 = vshrl.u32 %v849, 7
    %v851 = vsub.s32 3, %v850
    %v852 = vrot.slane %v751, %v851
    %v853 = vmul.f32 %v835, %v840
    %v854 = vmul.f32 %v835, %v844
    %v855 = vmul.f32 %v835, %v848
    %v856 = vmul.f32 %v835, %v852
    %v857 = vadd.f32 %v801, %v853
    %v858 = vadd.f32 %v802, %v854
    %v859 = vadd.f32 %v803, %v855
    %v860 = vadd.f32 %v804, %v856
    %861 = vset.pattern.permute.xlu0 4
    %862 = vperm.xlu0 %861, %v45
    %v863 = vpop.permute.xlu0 %862
    %v865 = vlaneseq
    %v866 = vshrl.u32 %v865, 7
    %v867 = vsub.s32 4, %v866
    %v868 = vrot.slane %v748, %v867
    %v869 = vlaneseq
    %v870 = vshrl.u32 %v869, 7
    %v871 = vsub.s32 4, %v870
    %v872 = vrot.slane %v749, %v871
    %v873 = vlaneseq
    %v874 = vshrl.u32 %v873, 7
    %v875 = vsub.s32 4, %v874
    %v876 = vrot.slane %v750, %v875
    %v877 = vlaneseq
    %v878 = vshrl.u32 %v877, 7
    %v879 = vsub.s32 4, %v878
    %v880 = vrot.slane %v751, %v879
    %v881 = vmul.f32 %v863, %v868
    %v882 = vmul.f32 %v863, %v872
    %v883 = vmul.f32 %v863, %v876
    %v884 = vmul.f32 %v863, %v880
    %v885 = vadd.f32 %v829, %v881
    %v886 = vadd.f32 %v830, %v882
    %v887 = vadd.f32 %v831, %v883
    %v888 = vadd.f32 %v832, %v884
    %889 = vset.pattern.permute.xlu0 5
    %890 = vperm.xlu0 %889, %v45
    %v891 = vpop.permute.xlu0 %890
    %v893 = vlaneseq
    %v894 = vshrl.u32 %v893, 7
    %v895 = vsub.s32 5, %v894
    %v896 = vrot.slane %v748, %v895
    %v897 = vlaneseq
    %v898 = vshrl.u32 %v897, 7
    %v899 = vsub.s32 5, %v898
    %v900 = vrot.slane %v749, %v899
    %v901 = vlaneseq
    %v902 = vshrl.u32 %v901, 7
    %v903 = vsub.s32 5, %v902
    %v904 = vrot.slane %v750, %v903
    %v905 = vlaneseq
    %v906 = vshrl.u32 %v905, 7
    %v907 = vsub.s32 5, %v906
    %v908 = vrot.slane %v751, %v907
    %v909 = vmul.f32 %v891, %v896
    %v910 = vmul.f32 %v891, %v900
    %v911 = vmul.f32 %v891, %v904
    %v912 = vmul.f32 %v891, %v908
    %v913 = vadd.f32 %v857, %v909
    %v914 = vadd.f32 %v858, %v910
    %v915 = vadd.f32 %v859, %v911
    %v916 = vadd.f32 %v860, %v912
    %917 = vset.pattern.permute.xlu0 6
    %918 = vperm.xlu0 %917, %v45
    %v919 = vpop.permute.xlu0 %918
    %v921 = vlaneseq
    %v922 = vshrl.u32 %v921, 7
    %v923 = vsub.s32 6, %v922
    %v924 = vrot.slane %v748, %v923
    %v925 = vlaneseq
    %v926 = vshrl.u32 %v925, 7
    %v927 = vsub.s32 6, %v926
    %v928 = vrot.slane %v749, %v927
    %v929 = vlaneseq
    %v930 = vshrl.u32 %v929, 7
    %v931 = vsub.s32 6, %v930
    %v932 = vrot.slane %v750, %v931
    %v933 = vlaneseq
    %v934 = vshrl.u32 %v933, 7
    %v935 = vsub.s32 6, %v934
    %v936 = vrot.slane %v751, %v935
    %v937 = vmul.f32 %v919, %v924
    %v938 = vmul.f32 %v919, %v928
    %v939 = vmul.f32 %v919, %v932
    %v940 = vmul.f32 %v919, %v936
    %v941 = vadd.f32 %v885, %v937
    %v942 = vadd.f32 %v886, %v938
    %v943 = vadd.f32 %v887, %v939
    %v944 = vadd.f32 %v888, %v940
    %945 = vset.pattern.permute.xlu0 7
    %946 = vperm.xlu0 %945, %v45
    %v947 = vpop.permute.xlu0 %946
    %v949 = vlaneseq
    %v950 = vshrl.u32 %v949, 7
    %v951 = vsub.s32 7, %v950
    %v952 = vrot.slane %v748, %v951
    %v953 = vlaneseq
    %v954 = vshrl.u32 %v953, 7
    %v955 = vsub.s32 7, %v954
    %v956 = vrot.slane %v749, %v955
    %v957 = vlaneseq
    %v958 = vshrl.u32 %v957, 7
    %v959 = vsub.s32 7, %v958
    %v960 = vrot.slane %v750, %v959
    %v961 = vlaneseq
    %v962 = vshrl.u32 %v961, 7
    %v963 = vsub.s32 7, %v962
    %v964 = vrot.slane %v751, %v963
    %v965 = vmul.f32 %v947, %v952
    %v966 = vmul.f32 %v947, %v956
    %v967 = vmul.f32 %v947, %v960
    %v968 = vmul.f32 %v947, %v964
    %v969 = vadd.f32 %v913, %v965
    %v970 = vadd.f32 %v914, %v966
    %v971 = vadd.f32 %v915, %v967
    %v972 = vadd.f32 %v916, %v968
    %973 = vset.pattern.permute.xlu0 8
    %974 = vperm.xlu0 %973, %v45
    %v975 = vpop.permute.xlu0 %974
    %v977 = vlaneseq
    %v978 = vshrl.u32 %v977, 7
    %v979 = vsub.s32 0, %v978
    %v980 = vrot.slane %v752, %v979
    %v981 = vlaneseq
    %v982 = vshrl.u32 %v981, 7
    %v983 = vsub.s32 0, %v982
    %v984 = vrot.slane %v753, %v983
    %v985 = vlaneseq
    %v986 = vshrl.u32 %v985, 7
    %v987 = vsub.s32 0, %v986
    %v988 = vrot.slane %v754, %v987
    %v989 = vlaneseq
    %v990 = vshrl.u32 %v989, 7
    %v991 = vsub.s32 0, %v990
    %v992 = vrot.slane %v755, %v991
    %v993 = vmul.f32 %v975, %v980
    %v994 = vmul.f32 %v975, %v984
    %v995 = vmul.f32 %v975, %v988
    %v996 = vmul.f32 %v975, %v992
    %v997 = vadd.f32 %v941, %v993
    %v998 = vadd.f32 %v942, %v994
    %v999 = vadd.f32 %v943, %v995
    %v1000 = vadd.f32 %v944, %v996
    %1001 = vset.pattern.permute.xlu0 9
    %1002 = vperm.xlu0 %1001, %v45
    %v1003 = vpop.permute.xlu0 %1002
    %v1005 = vlaneseq
    %v1006 = vshrl.u32 %v1005, 7
    %v1007 = vsub.s32 1, %v1006
    %v1008 = vrot.slane %v752, %v1007
    %v1009 = vlaneseq
    %v1010 = vshrl.u32 %v1009, 7
    %v1011 = vsub.s32 1, %v1010
    %v1012 = vrot.slane %v753, %v1011
    %v1013 = vlaneseq
    %v1014 = vshrl.u32 %v1013, 7
    %v1015 = vsub.s32 1, %v1014
    %v1016 = vrot.slane %v754, %v1015
    %v1017 = vlaneseq
    %v1018 = vshrl.u32 %v1017, 7
    %v1019 = vsub.s32 1, %v1018
    %v1020 = vrot.slane %v755, %v1019
    %v1021 = vmul.f32 %v1003, %v1008
    %v1022 = vmul.f32 %v1003, %v1012
    %v1023 = vmul.f32 %v1003, %v1016
    %v1024 = vmul.f32 %v1003, %v1020
    %v1025 = vadd.f32 %v969, %v1021
    %v1026 = vadd.f32 %v970, %v1022
    %v1027 = vadd.f32 %v971, %v1023
    %v1028 = vadd.f32 %v972, %v1024
    %1029 = vset.pattern.permute.xlu0 10
    %1030 = vperm.xlu0 %1029, %v45
    %v1031 = vpop.permute.xlu0 %1030
    %v1033 = vlaneseq
    %v1034 = vshrl.u32 %v1033, 7
    %v1035 = vsub.s32 2, %v1034
    %v1036 = vrot.slane %v752, %v1035
    %v1037 = vlaneseq
    %v1038 = vshrl.u32 %v1037, 7
    %v1039 = vsub.s32 2, %v1038
    %v1040 = vrot.slane %v753, %v1039
    %v1041 = vlaneseq
    %v1042 = vshrl.u32 %v1041, 7
    %v1043 = vsub.s32 2, %v1042
    %v1044 = vrot.slane %v754, %v1043
    %v1045 = vlaneseq
    %v1046 = vshrl.u32 %v1045, 7
    %v1047 = vsub.s32 2, %v1046
    %v1048 = vrot.slane %v755, %v1047
    %v1049 = vmul.f32 %v1031, %v1036
    %v1050 = vmul.f32 %v1031, %v1040
    %v1051 = vmul.f32 %v1031, %v1044
    %v1052 = vmul.f32 %v1031, %v1048
    %v1053 = vadd.f32 %v997, %v1049
    %v1054 = vadd.f32 %v998, %v1050
    %v1055 = vadd.f32 %v999, %v1051
    %v1056 = vadd.f32 %v1000, %v1052
    %1057 = vset.pattern.permute.xlu0 11
    %1058 = vperm.xlu0 %1057, %v45
    %v1059 = vpop.permute.xlu0 %1058
    %v1061 = vlaneseq
    %v1062 = vshrl.u32 %v1061, 7
    %v1063 = vsub.s32 3, %v1062
    %v1064 = vrot.slane %v752, %v1063
    %v1065 = vlaneseq
    %v1066 = vshrl.u32 %v1065, 7
    %v1067 = vsub.s32 3, %v1066
    %v1068 = vrot.slane %v753, %v1067
    %v1069 = vlaneseq
    %v1070 = vshrl.u32 %v1069, 7
    %v1071 = vsub.s32 3, %v1070
    %v1072 = vrot.slane %v754, %v1071
    %v1073 = vlaneseq
    %v1074 = vshrl.u32 %v1073, 7
    %v1075 = vsub.s32 3, %v1074
    %v1076 = vrot.slane %v755, %v1075
    %v1077 = vmul.f32 %v1059, %v1064
    %v1078 = vmul.f32 %v1059, %v1068
    %v1079 = vmul.f32 %v1059, %v1072
    %v1080 = vmul.f32 %v1059, %v1076
    %v1081 = vadd.f32 %v1025, %v1077
    %v1082 = vadd.f32 %v1026, %v1078
    %v1083 = vadd.f32 %v1027, %v1079
    %v1084 = vadd.f32 %v1028, %v1080
    %v1085 = vadd.f32 %v1053, %v1081
    %v1086 = vadd.f32 %v1054, %v1082
    %v1087 = vadd.f32 %v1055, %v1083
    %v1088 = vadd.f32 %v1056, %v1084
    %v1089 = vld [vmem:[%s6] sm:$0xf]
    %1091 = vset.pattern.permute.xlu0 0
    %1092 = vperm.xlu0 %1091, %v1089
    %v1093 = vpop.permute.xlu0 %1092
    %v1095 = vadd.f32 %v1085, %v1093
    %v1096 = vadd.f32 %v1086, %v1093
    %v1097 = vadd.f32 %v1087, %v1093
    %v1098 = vadd.f32 %v1088, %v1093
    %v1099 = vcombine.high %v41, %v41
    %v1100 = vcombine.high %v42, %v42
    %v1103 = vadd.f32 %v1095, %v41
    %v1104 = vadd.f32 %v1096, %v1099
    %v1105 = vadd.f32 %v1097, %v42
    %v1106 = vadd.f32 %v1098, %v1100
    %v1111 = vcombine.low %v1103, %v1104
    %v1112 = vcombine.low %v1105, %v1106
    %1115 = vst [vmem:[#allocation5] sm:$0xff] %v1111
    %1116 = vst [vmem:[#allocation5 + $0x8] sm:$0xff] %v1112
    // Predicated region
    $region34: #{tpu_custom_call.1} parent=1 // pred_check
      _
    $region35: #{tpu_custom_call.1} parent=1 // pred_check_branch
      %1118 = sbr.rel (0) target = $region37
    $region36: #{tpu_custom_call.1} parent=1 // pred_region
      %s1120 = ssub.s32 256, 256
      %1121 = vsyncadd [#allocation4], %s1120
      %s1123 = sshll.u32 [#allocation5], 4
      %s1124 = int_to_ptr.vmem [resolvable:$true] %s1123
      %1126 = dma.vmem_to_hbm [thread:$0]  %s1124, 256, %s7, [#allocation4]
    $region37: #{tpu_custom_call.1} parent=1 // pred_fallthru
      _
    // Predicated region
    $region38: #{tpu_custom_call.1} parent=1 // pred_check
      _
    $region39: #{tpu_custom_call.1} parent=1 // pred_check_branch
      %1128 = sbr.rel (0) target = $region41
    $region40: #{tpu_custom_call.1} parent=1 // pred_region
      %1129 = dma.done [#allocation4], 256
    $region41: #{tpu_custom_call.1} parent=1 // pred_fallthru
      _
    %1130 = vsyncpa [#allocation3], 1
    %1131 = vsyncpa [#allocation4], 1

</llo_original>
